<compile_context>
chip_gen: v6e
topology: v6e:2x2x1
jax: 0.10.0
libtpu: 0.0.40
codegen_flags: <defaults>
</compile_context>

<pallas_src>
import functools
import math

import jax
import jax.numpy as jnp
from jax.experimental import pallas as pl
from jax.experimental.pallas import tpu as pltpu


def _round_up(n, m):
    return ((n + m - 1) // m) * m


def _noncausal_kernel(xm_ref, xt_ref, y_ref, w_ref, b_ref, wo_ref, bo_ref, out_ref,
                      *, dc, cres, sc, radix, dilation, pad, gate_dtype, split_store):
    # xm_ref : (1, tt, Cres)        x main window (rows [t*tt, t*tt+tt) of padded x), bf16
    # xt_ref : (1, H,  Cres)        x halo tail   (rows [t*tt+tt, t*tt+tt+H)), bf16
    # y_ref  : (1, tt, 2*DC)        conditioning, bf16
    # w_ref  : (radix, Cres, 2*DC)  per-tap dilated-conv weights, bf16
    # b_ref  : (1, 2*DC)            f32
    # wo_ref : (DC, Cres+SC)        1x1 conv weights with the 0.5 gate factor folded in, bf16
    # bo_ref : (1, Cres+SC)         f32
    # out_ref: (1, tt, Cres+SC)     fused [res | skip]
    tt = xm_ref.shape[1]

    # Halo'd x window for this tile (VMEM-local copy; x itself was read from HBM once).
    xh = jnp.concatenate([xm_ref[0], xt_ref[0]], axis=0)          # (tt+H, Cres)

    # Dilated conv as radix accumulated MXU matmuls, accumulated onto y + bias in f32.
    acc = y_ref[0].astype(jnp.float32) + b_ref[...].astype(jnp.float32)
    for r in range(radix):
        acc = acc + jnp.dot(xh[r * dilation:r * dilation + tt, :], w_ref[r],
                            preferred_element_type=jnp.float32)

    # Gate: sigmoid(zf) = 0.5*(tanh(0.5*zf)+1); the outer 0.5 is folded into wo_ref.
    zw = acc[:, :dc].astype(gate_dtype)
    zf = acc[:, dc:].astype(gate_dtype)
    z = jnp.tanh(zw) * (jnp.tanh(0.5 * zf) + 1.0)

    out = jnp.dot(z.astype(wo_ref.dtype), wo_ref[...],
                  preferred_element_type=jnp.float32)
    out = out + bo_ref[...].astype(jnp.float32)

    # Residual x rows [t*tt, t*tt+tt) == halo rows [pad, pad+tt) (valid for any radix parity).
    x_res = xh[pad:pad + tt, :].astype(jnp.float32)

    if split_store:
        # Lane-aligned channel counts: two unmasked sub-range stores, no concat temp.
        out_ref[0, :, :cres] = (out[:, :cres] + x_res).astype(out_ref.dtype)
        out_ref[0, :, cres:] = out[:, cres:].astype(out_ref.dtype)
    else:
        out_ref[0] = jnp.concatenate(
            [out[:, :cres] + x_res, out[:, cres:]], axis=-1).astype(out_ref.dtype)


def noncausal_layer(x_ncl, y_ncl, conv_w, conv_b, wo_w, wo_b, *,
                    dilation, radix, dilation_channels, residual_channels,
                    skip_channels, time_tile=None, compute_dtype=jnp.bfloat16,
                    gate_dtype=None, out_dtype=None):
    """x_ncl: (B, Cres, T), y_ncl: (B, 2*DC, T). Returns (res, skip) in NCL layout."""
    B, Cres, T = x_ncl.shape
    DC = dilation_channels
    SC = skip_channels
    assert Cres == residual_channels
    assert dilation * (radix - 1) % 2 == 0, (
        "PyTorch same-length Conv1d requires dilation*(radix-1) to be even")
    pad = dilation * (radix - 1) // 2

    if gate_dtype is None:
        gate_dtype = compute_dtype       # bf16 gate math (v6e/v7x); pass f32 on v5e
    if out_dtype is None:
        out_dtype = x_ncl.dtype

    # Halo tail rows (sublane-aligned) and the tile alignment it implies.
    H = _round_up(max(2 * pad, 8), 8)
    align = (16 * H) // math.gcd(16, H)           # tt multiple of 16 (bf16) and of H

    # ---- generation-aware VMEM budget / tile sizing ------------------------
    try:
        phys_vmem = int(pltpu.get_tpu_info().vmem_capacity_bytes)
    except Exception:
        phys_vmem = 64 << 20                       # conservative (v7x per-TC)
    vmem_cap = max(16 << 20, min((phys_vmem * 3) // 4, 100 << 20))
    if time_tile is None:
        time_tile = 2048 if vmem_cap >= (80 << 20) else 1024

    cb = jnp.dtype(compute_dtype).itemsize
    gb = jnp.dtype(gate_dtype).itemsize
    ob = jnp.dtype(out_dtype).itemsize

    def est_vmem(tt_):
        stream = 2 * ((tt_ + H) * Cres * cb + tt_ * 2 * DC * cb
                      + tt_ * (Cres + SC) * ob)                     # double-buffered streams
        weights = 2 * (radix * Cres * 2 * DC * cb + DC * (Cres + SC) * cb
                       + 2 * DC * 4 + (Cres + SC) * 4)
        temps = ((tt_ + H) * Cres * cb + tt_ * 2 * DC * 4 + 5 * tt_ * DC * gb
                 + tt_ * DC * cb + 2 * tt_ * (Cres + SC) * 4 + tt_ * Cres * 4)
        return stream + weights + temps + (2 << 20)

    tt = max(align, (min(time_tile, _round_up(T, align)) // align) * align)
    while tt > align and est_vmem(tt) > vmem_cap:
        tt = max(align, ((tt // 2) // align) * align)

    T_round = _round_up(T, tt)
    n_t = T_round // tt
    blocks_per_tile = tt // H

    # ---- layout plumbing (TODO(synk): hoist per-model, keep (B,T,C) across layers) ---
    x_btc = jnp.transpose(x_ncl, (0, 2, 1)).astype(compute_dtype)             # (B, T, Cres)
    xpad = jnp.pad(x_btc, ((0, 0), (pad, T_round + H - pad - T), (0, 0)))     # (B, T_round+H, Cres)
    y_btc = jnp.pad(jnp.transpose(y_ncl, (0, 2, 1)).astype(compute_dtype),
                    ((0, 0), (0, T_round - T), (0, 0)))                       # (B, T_round, 2DC)

    # Per-tap weights: w3[r, c, o] = conv_w[o, c, r]
    w3 = jnp.transpose(conv_w, (2, 1, 0)).astype(compute_dtype)               # (radix, Cres, 2DC)
    b_row = conv_b.reshape(1, 2 * DC).astype(jnp.float32)
    # Fold the 0.5 of sigmoid(zf) = 0.5*(tanh(0.5*zf)+1) into the 1x1 conv weights.
    wo_mat = (0.5 * jnp.transpose(wo_w[:, :, 0], (1, 0))).astype(compute_dtype)  # (DC, Cres+SC)
    bo_row = wo_b.reshape(1, Cres + SC).astype(jnp.float32)

    split_store = (Cres % 128 == 0) and (SC % 128 == 0)

    kernel = functools.partial(
        _noncausal_kernel, dc=DC, cres=Cres, sc=SC, radix=radix, dilation=dilation,
        pad=pad, gate_dtype=gate_dtype, split_store=split_store)

    vmem_limit = int(min(vmem_cap, max(est_vmem(tt) + (4 << 20), 16 << 20)))

    out_btc = pl.pallas_call(
        kernel,
        out_shape=jax.ShapeDtypeStruct((B, T_round, Cres + SC), out_dtype),
        grid_spec=pltpu.PrefetchScalarGridSpec(
            num_scalar_prefetch=0,
            grid=(B, n_t),
            in_specs=[
                pl.BlockSpec((1, tt, Cres), lambda b, t: (b, t, 0)),             # x main
                pl.BlockSpec((1, H, Cres),                                        # x halo tail
                             lambda b, t: (b, (t + 1) * blocks_per_tile, 0)),
                pl.BlockSpec((1, tt, 2 * DC), lambda b, t: (b, t, 0)),            # y
                pl.BlockSpec((radix, Cres, 2 * DC), lambda b, t: (0, 0, 0)),      # conv W (per tap)
                pl.BlockSpec((1, 2 * DC), lambda b, t: (0, 0)),                   # conv b
                pl.BlockSpec((DC, Cres + SC), lambda b, t: (0, 0)),               # W_o (0.5-folded)
                pl.BlockSpec((1, Cres + SC), lambda b, t: (0, 0)),                # b_o
            ],
            out_specs=pl.BlockSpec((1, tt, Cres + SC), lambda b, t: (b, t, 0)),
        ),
        compiler_params=pltpu.CompilerParams(
            dimension_semantics=("parallel", "parallel"),
            vmem_limit_bytes=vmem_limit),
    )(xpad, xpad, y_btc, w3, b_row, wo_mat, bo_row)

    # Split fused output and go back to PyTorch NCL layout.
    res = jnp.transpose(out_btc[:, :T, :Cres], (0, 2, 1))
    skip = jnp.transpose(out_btc[:, :T, Cres:], (0, 2, 1))
    return res, skip


# ---------------------------- references -------------------------------------

_HI = jax.lax.Precision.HIGHEST


def _reference_f32(x, y, conv_w, conv_b, wo_w, wo_b, *, dilation, radix, DC, Cres):
    """PyTorch-faithful f32 reference."""
    T = x.shape[-1]
    pad = dilation * (radix - 1) // 2
    xp = jnp.pad(x, ((0, 0), (0, 0), (pad, pad)))
    xy = conv_b[None, :, None] + y
    for r in range(radix):
        xy = xy + jnp.einsum('oc,bct->bot', conv_w[:, :, r],
                             xp[:, :, r * dilation:r * dilation + T], precision=_HI)
    zw, zf = xy[:, :DC], xy[:, DC:]
    z = jnp.tanh(zw) * jax.nn.sigmoid(zf)
    out = jnp.einsum('oc,bct->bot', wo_w[:, :, 0], z, precision=_HI) + wo_b[None, :, None]
    return out[:, :Cres] + x, out[:, Cres:]


def _reference_structural(x, y, conv_w, conv_b, wo_w, wo_b, *, dilation, radix, DC, Cres,
                          compute_dtype=jnp.bfloat16):
    """Mirrors the kernel's dtype flow exactly (bf16 operands, f32 accum, f32 gate,
    0.5 folded into W_o, bf16 residual) for a tight structural check."""
    T = x.shape[-1]
    pad = dilation * (radix - 1) // 2

    def q(a):
        return a.astype(compute_dtype).astype(jnp.float32)

    xq = q(x)
    xp = jnp.pad(xq, ((0, 0), (0, 0), (pad, pad)))
    xy = conv_b[None, :, None] + q(y)
    for r in range(radix):
        xy = xy + jnp.einsum('oc,bct->bot', q(conv_w[:, :, r]),
                             xp[:, :, r * dilation:r * dilation + T], precision=_HI)
    zw, zf = xy[:, :DC], xy[:, DC:]
    zprime = jnp.tanh(zw) * (jnp.tanh(0.5 * zf) + 1.0)
    wo_half = q(0.5 * wo_w[:, :, 0])
    out = jnp.einsum('oc,bct->bot', wo_half, q(zprime), precision=_HI)
    out = out + wo_b[None, :, None]
    return out[:, :Cres] + xq, out[:, Cres:]


# ------------------------------- test -----------------------------------------

if __name__ == "__main__":
    key = jax.random.PRNGKey(0)
    kp1, kx1, ky1, kp2, kx2, ky2 = jax.random.split(key, 6)

    def make_params(k, Cres, DC, SC, radix):
        k1, k2, k3, k4 = jax.random.split(k, 4)
        conv_w = 0.1 * jax.random.normal(k1, (2 * DC, Cres, radix), jnp.float32)
        conv_b = 0.1 * jax.random.normal(k2, (2 * DC,), jnp.float32)
        wo_w = 0.1 * jax.random.normal(k3, (Cres + SC, DC, 1), jnp.float32)
        wo_b = 0.1 * jax.random.normal(k4, (Cres + SC,), jnp.float32)
        return conv_w, conv_b, wo_w, wo_b

    # --- Test 1: small unaligned channels, odd radix, multi-tile grid, f32 gate ---
    B, Cres, DC, SC, radix, dilation, T = 2, 8, 16, 8, 3, 2, 48
    conv_w, conv_b, wo_w, wo_b = make_params(kp1, Cres, DC, SC, radix)
    x = jax.random.normal(kx1, (B, Cres, T), jnp.float32)
    y = jax.random.normal(ky1, (B, 2 * DC, T), jnp.float32)

    res, skip = noncausal_layer(
        x, y, conv_w, conv_b, wo_w, wo_b,
        dilation=dilation, radix=radix, dilation_channels=DC,
        residual_channels=Cres, skip_channels=SC,
        time_tile=16, gate_dtype=jnp.float32)          # grid = (2, 3): pipelined path
    jax.block_until_ready((res, skip))
    assert res.shape == (B, Cres, T) and skip.shape == (B, SC, T)

    res_s, skip_s = _reference_structural(
        x, y, conv_w, conv_b, wo_w, wo_b,
        dilation=dilation, radix=radix, DC=DC, Cres=Cres)
    assert jnp.allclose(res, res_s, atol=1e-3, rtol=1e-3)
    assert jnp.allclose(skip, skip_s, atol=1e-3, rtol=1e-3)

    res_f, skip_f = _reference_f32(
        x, y, conv_w, conv_b, wo_w, wo_b,
        dilation=dilation, radix=radix, DC=DC, Cres=Cres)
    assert jnp.allclose(res, res_f, atol=5e-2, rtol=5e-2)
    assert jnp.allclose(skip, skip_f, atol=5e-2, rtol=5e-2)

    # --- Test 2: 128-aligned channels, even radix, bf16 gate, split-store path ---
    B2, Cres2, DC2, SC2, radix2, dilation2, T2 = 1, 128, 128, 128, 2, 4, 64
    conv_w2, conv_b2, wo_w2, wo_b2 = make_params(kp2, Cres2, DC2, SC2, radix2)
    x2 = jax.random.normal(kx2, (B2, Cres2, T2), jnp.float32)
    y2 = jax.random.normal(ky2, (B2, 2 * DC2, T2), jnp.float32)

    res2, skip2 = noncausal_layer(
        x2, y2, conv_w2, conv_b2, wo_w2, wo_b2,
        dilation=dilation2, radix=radix2, dilation_channels=DC2,
        residual_channels=Cres2, skip_channels=SC2)    # defaults: bf16 gate, auto tile
    jax.block_until_ready((res2, skip2))
    assert res2.shape == (B2, Cres2, T2) and skip2.shape == (B2, SC2, T2)

    res2_f, skip2_f = _reference_f32(
        x2, y2, conv_w2, conv_b2, wo_w2, wo_b2,
        dilation=dilation2, radix=radix2, DC=DC2, Cres=Cres2)
    assert jnp.allclose(res2, res2_f, atol=5e-2, rtol=5e-2)
    assert jnp.allclose(skip2, skip2_f, atol=5e-2, rtol=5e-2)

    print("KERNEL_OK")
</pallas_src>

<mosaic_0001>
module attributes {stable_mosaic.version = 11 : i64} {
  func.func @_noncausal_kernel(%arg0: i32, %arg1: i32, %arg2: memref<1x16x8xbf16, #tpu.memory_space<vmem>>, %arg3: memref<1x8x8xbf16, #tpu.memory_space<vmem>>, %arg4: memref<1x16x32xbf16, #tpu.memory_space<vmem>>, %arg5: memref<3x8x32xbf16, #tpu.memory_space<vmem>>, %arg6: memref<1x32xf32, #tpu.memory_space<vmem>>, %arg7: memref<16x16xbf16, #tpu.memory_space<vmem>>, %arg8: memref<1x16xf32, #tpu.memory_space<vmem>>, %arg9: memref<1x16x16xf32, #tpu.memory_space<vmem>>) attributes {dimension_semantics = [#tpu.dimension_semantics<parallel>, #tpu.dimension_semantics<parallel>], iteration_bounds = array<i64: 2, 3>, scalar_prefetch = 0 : i64, scratch_operands = 0 : i64, tpu.core_type = #tpu.core_type<tc>, window_params = [{transform_indices = @transform_0, window_bounds = array<i64: 1, 16, 8>}, {transform_indices = @transform_1, window_bounds = array<i64: 1, 8, 8>}, {transform_indices = @transform_2, window_bounds = array<i64: 1, 16, 32>}, {pipeline_mode = #tpu.pipeline_mode<synchronous>, transform_indices = @transform_3, window_bounds = array<i64: 3, 8, 32>}, {pipeline_mode = #tpu.pipeline_mode<synchronous>, transform_indices = @transform_4, window_bounds = array<i64: 1, 32>}, {pipeline_mode = #tpu.pipeline_mode<synchronous>, transform_indices = @transform_5, window_bounds = array<i64: 16, 16>}, {pipeline_mode = #tpu.pipeline_mode<synchronous>, transform_indices = @transform_6, window_bounds = array<i64: 1, 16>}, {transform_indices = @transform_7, window_bounds = array<i64: 1, 16, 16>}]} {
    %c0 = arith.constant 0 : index
    %c0_0 = arith.constant 0 : index
    %c0_1 = arith.constant 0 : index
    %0 = vector.load %arg2[%c0, %c0_0, %c0_1] : memref<1x16x8xbf16, #tpu.memory_space<vmem>>, vector<1x16x8xbf16>
    %1 = vector.shape_cast %0 : vector<1x16x8xbf16> to vector<16x8xbf16>
    %c0_2 = arith.constant 0 : index
    %c0_3 = arith.constant 0 : index
    %c0_4 = arith.constant 0 : index
    %2 = vector.load %arg3[%c0_2, %c0_3, %c0_4] : memref<1x8x8xbf16, #tpu.memory_space<vmem>>, vector<1x8x8xbf16>
    %3 = vector.shape_cast %2 : vector<1x8x8xbf16> to vector<8x8xbf16>
    %4 = tpu.concatenate %1, %3 in 0 : vector<16x8xbf16>, vector<8x8xbf16> -> vector<24x8xbf16>
    %c0_5 = arith.constant 0 : index
    %c0_6 = arith.constant 0 : index
    %c0_7 = arith.constant 0 : index
    %5 = vector.load %arg4[%c0_5, %c0_6, %c0_7] : memref<1x16x32xbf16, #tpu.memory_space<vmem>>, vector<1x16x32xbf16>
    %6 = vector.shape_cast %5 : vector<1x16x32xbf16> to vector<16x32xbf16>
    %7 = arith.extf %6 : vector<16x32xbf16> to vector<16x32xf32>
    %c0_8 = arith.constant 0 : index
    %c0_9 = arith.constant 0 : index
    %8 = vector.load %arg6[%c0_8, %c0_9] : memref<1x32xf32, #tpu.memory_space<vmem>>, vector<1x32xf32>
    %9 = vector.broadcast %8 : vector<1x32xf32> to vector<16x32xf32>
    %10 = arith.addf %7, %9 : vector<16x32xf32>
    %11 = vector.extract_strided_slice %4 {offsets = [0, 0], sizes = [16, 8], strides = [1, 1]} : vector<24x8xbf16> to vector<16x8xbf16>
    %c0_10 = arith.constant 0 : index
    %c0_11 = arith.constant 0 : index
    %c0_12 = arith.constant 0 : index
    %12 = vector.load %arg5[%c0_10, %c0_11, %c0_12] : memref<3x8x32xbf16, #tpu.memory_space<vmem>>, vector<1x8x32xbf16>
    %13 = vector.shape_cast %12 : vector<1x8x32xbf16> to vector<8x32xbf16>
    %cst = arith.constant dense<0.000000e+00> : vector<16x32xf32>
    %14 = tpu.matmul %11, %13, %cst {dimension_numbers = #tpu.dot_dimension_numbers<[1], [0], [0], [1], [0, 0, 1, 1], [], []>} : vector<16x8xbf16>, vector<8x32xbf16>, vector<16x32xf32> -> vector<16x32xf32>
    %15 = arith.addf %10, %14 : vector<16x32xf32>
    %16 = vector.extract_strided_slice %4 {offsets = [2, 0], sizes = [16, 8], strides = [1, 1]} : vector<24x8xbf16> to vector<16x8xbf16>
    %c1 = arith.constant 1 : index
    %c0_13 = arith.constant 0 : index
    %c0_14 = arith.constant 0 : index
    %17 = vector.load %arg5[%c1, %c0_13, %c0_14] : memref<3x8x32xbf16, #tpu.memory_space<vmem>>, vector<1x8x32xbf16>
    %18 = vector.shape_cast %17 : vector<1x8x32xbf16> to vector<8x32xbf16>
    %cst_15 = arith.constant dense<0.000000e+00> : vector<16x32xf32>
    %19 = tpu.matmul %16, %18, %cst_15 {dimension_numbers = #tpu.dot_dimension_numbers<[1], [0], [0], [1], [0, 0, 1, 1], [], []>} : vector<16x8xbf16>, vector<8x32xbf16>, vector<16x32xf32> -> vector<16x32xf32>
    %20 = arith.addf %15, %19 : vector<16x32xf32>
    %21 = vector.extract_strided_slice %4 {offsets = [4, 0], sizes = [16, 8], strides = [1, 1]} : vector<24x8xbf16> to vector<16x8xbf16>
    %c2 = arith.constant 2 : index
    %c0_16 = arith.constant 0 : index
    %c0_17 = arith.constant 0 : index
    %22 = vector.load %arg5[%c2, %c0_16, %c0_17] : memref<3x8x32xbf16, #tpu.memory_space<vmem>>, vector<1x8x32xbf16>
    %23 = vector.shape_cast %22 : vector<1x8x32xbf16> to vector<8x32xbf16>
    %cst_18 = arith.constant dense<0.000000e+00> : vector<16x32xf32>
    %24 = tpu.matmul %21, %23, %cst_18 {dimension_numbers = #tpu.dot_dimension_numbers<[1], [0], [0], [1], [0, 0, 1, 1], [], []>} : vector<16x8xbf16>, vector<8x32xbf16>, vector<16x32xf32> -> vector<16x32xf32>
    %25 = arith.addf %20, %24 : vector<16x32xf32>
    %26 = vector.extract_strided_slice %25 {offsets = [0, 0], sizes = [16, 16], strides = [1, 1]} : vector<16x32xf32> to vector<16x16xf32>
    %27 = vector.extract_strided_slice %25 {offsets = [0, 16], sizes = [16, 16], strides = [1, 1]} : vector<16x32xf32> to vector<16x16xf32>
    %28 = math.tanh %26 : vector<16x16xf32>
    %cst_19 = arith.constant 5.000000e-01 : f32
    %29 = vector.broadcast %cst_19 : f32 to vector<16x16xf32>
    %30 = arith.mulf %29, %27 : vector<16x16xf32>
    %31 = math.tanh %30 : vector<16x16xf32>
    %cst_20 = arith.constant 1.000000e+00 : f32
    %32 = vector.broadcast %cst_20 : f32 to vector<16x16xf32>
    %33 = arith.addf %31, %32 : vector<16x16xf32>
    %34 = arith.mulf %28, %33 : vector<16x16xf32>
    %35 = arith.truncf %34 : vector<16x16xf32> to vector<16x16xbf16>
    %c0_21 = arith.constant 0 : index
    %c0_22 = arith.constant 0 : index
    %36 = vector.load %arg7[%c0_21, %c0_22] : memref<16x16xbf16, #tpu.memory_space<vmem>>, vector<16x16xbf16>
    %cst_23 = arith.constant dense<0.000000e+00> : vector<16x16xf32>
    %37 = tpu.matmul %35, %36, %cst_23 {dimension_numbers = #tpu.dot_dimension_numbers<[1], [0], [0], [1], [0, 0, 1, 1], [], []>} : vector<16x16xbf16>, vector<16x16xbf16>, vector<16x16xf32> -> vector<16x16xf32>
    %c0_24 = arith.constant 0 : index
    %c0_25 = arith.constant 0 : index
    %38 = vector.load %arg8[%c0_24, %c0_25] : memref<1x16xf32, #tpu.memory_space<vmem>>, vector<1x16xf32>
    %39 = vector.broadcast %38 : vector<1x16xf32> to vector<16x16xf32>
    %40 = arith.addf %37, %39 : vector<16x16xf32>
    %41 = vector.extract_strided_slice %4 {offsets = [2, 0], sizes = [16, 8], strides = [1, 1]} : vector<24x8xbf16> to vector<16x8xbf16>
    %42 = arith.extf %41 : vector<16x8xbf16> to vector<16x8xf32>
    %43 = vector.extract_strided_slice %40 {offsets = [0, 0], sizes = [16, 8], strides = [1, 1]} : vector<16x16xf32> to vector<16x8xf32>
    %44 = arith.addf %43, %42 : vector<16x8xf32>
    %45 = vector.extract_strided_slice %40 {offsets = [0, 8], sizes = [16, 8], strides = [1, 1]} : vector<16x16xf32> to vector<16x8xf32>
    %46 = tpu.concatenate %44, %45 in 1 : vector<16x8xf32>, vector<16x8xf32> -> vector<16x16xf32>
    %c0_26 = arith.constant 0 : index
    %c0_27 = arith.constant 0 : index
    %c0_28 = arith.constant 0 : index
    %47 = vector.load %arg9[%c0_26, %c0_27, %c0_28] : memref<1x16x16xf32, #tpu.memory_space<vmem>>, vector<1x16x16xf32>
    %48 = vector.shape_cast %47 : vector<1x16x16xf32> to vector<16x16xf32>
    %49 = vector.shape_cast %46 : vector<16x16xf32> to vector<1x16x16xf32>
    tpu.vector_store %arg9[%c0_26, %c0_27, %c0_28], %49 {strides = array<i32>} : memref<1x16x16xf32, #tpu.memory_space<vmem>>, vector<1x16x16xf32>,
    return
  }
  func.func @transform_0(%arg0: i32, %arg1: i32) -> (i32, i32, i32) {
    %c0_i32 = arith.constant 0 : i32
    %c0_i32_0 = arith.constant 0 : i32
    return %arg0, %arg1, %c0_i32 : i32, i32, i32
  }
  func.func @transform_1(%arg0: i32, %arg1: i32) -> (i32, i32, i32) {
    %c1_i32 = arith.constant 1 : i32
    %0 = arith.addi %arg1, %c1_i32 : i32
    %c2_i32 = arith.constant 2 : i32
    %1 = arith.muli %0, %c2_i32 : i32
    %c0_i32 = arith.constant 0 : i32
    %c0_i32_0 = arith.constant 0 : i32
    return %arg0, %1, %c0_i32 : i32, i32, i32
  }
  func.func @transform_2(%arg0: i32, %arg1: i32) -> (i32, i32, i32) {
    %c0_i32 = arith.constant 0 : i32
    %c0_i32_0 = arith.constant 0 : i32
    return %arg0, %arg1, %c0_i32 : i32, i32, i32
  }
  func.func @transform_3(%arg0: i32, %arg1: i32) -> (i32, i32, i32) {
    %c0_i32 = arith.constant 0 : i32
    %c0_i32_0 = arith.constant 0 : i32
    %c0_i32_1 = arith.constant 0 : i32
    %c0_i32_2 = arith.constant 0 : i32
    return %c0_i32, %c0_i32_0, %c0_i32_1 : i32, i32, i32
  }
  func.func @transform_4(%arg0: i32, %arg1: i32) -> (i32, i32) {
    %c0_i32 = arith.constant 0 : i32
    %c0_i32_0 = arith.constant 0 : i32
    %c0_i32_1 = arith.constant 0 : i32
    return %c0_i32, %c0_i32_0 : i32, i32
  }
  func.func @transform_5(%arg0: i32, %arg1: i32) -> (i32, i32) {
    %c0_i32 = arith.constant 0 : i32
    %c0_i32_0 = arith.constant 0 : i32
    %c0_i32_1 = arith.constant 0 : i32
    return %c0_i32, %c0_i32_0 : i32, i32
  }
  func.func @transform_6(%arg0: i32, %arg1: i32) -> (i32, i32) {
    %c0_i32 = arith.constant 0 : i32
    %c0_i32_0 = arith.constant 0 : i32
    %c0_i32_1 = arith.constant 0 : i32
    return %c0_i32, %c0_i32_0 : i32, i32
  }
  func.func @transform_7(%arg0: i32, %arg1: i32) -> (i32, i32, i32) {
    %c0_i32 = arith.constant 0 : i32
    %c0_i32_0 = arith.constant 0 : i32
    return %arg0, %arg1, %c0_i32 : i32, i32, i32
  }
}

</mosaic_0001>

<llo_original>
// kernel: tpu_custom_call.1
$region0: #{tpu_custom_call.1}
  #allocation0 [shape = 'u32[]', space=smem, size = 0x4, offset = 0x4, fixed_abs, tag = 'smem constant byte address 0x4 - core index']
  #allocation1 [shape = 'u32[144,128]{1,0:T(1,128)}', space=vmem, size = 0x12000, scoped, tag = 'internal scratch']
  %s0 = inlined_call_operand.vmem [shape: bf16[2,56,8], index: 0, kind: input, shape index: {}]
  %s1 = inlined_call_operand.vmem [shape: bf16[2,56,8], index: 1, kind: input, shape index: {}]
  %s2 = inlined_call_operand.vmem [shape: bf16[2,48,32], index: 2, kind: input, shape index: {}]
  %s3 = inlined_call_operand.vmem [shape: bf16[3,8,32], index: 3, kind: input, shape index: {}]
  %s4 = inlined_call_operand.vmem [shape: f32[1,32], index: 4, kind: input, shape index: {}]
  %s5 = inlined_call_operand.vmem [shape: bf16[16,16], index: 5, kind: input, shape index: {}]
  %s6 = inlined_call_operand.vmem [shape: f32[1,16], index: 6, kind: input, shape index: {}]
  %s7 = inlined_call_operand.vmem [shape: f32[2,48,16], index: 7, kind: output, shape index: {}]
  %s8 = sld [smem:[#allocation0]]
  $region61: #{tpu_custom_call.1} parent=0
    _
  %s10 = ssub.s32 1, %s8
  %s11 = scalar_select 0, %s10, %s8
  loop: start=0, step=1, limit=8
  $region2: #{tpu_custom_call.1} parent=0 // loop_pre_header
    _
  $region3: #{tpu_custom_call.1} parent=0 // loop_header
    %s13 = sphi 0, %s17
    %p14 = scmp.ge.s32.totalorder %s13, 8
    %s20 = sphi 0, %s32
    %s21 = sphi 0, %s28
    %s22 = sphi 0, %s20
    %s23 = sphi 0, %s21
    %s24 = sphi 0, %s22
    %s25 = sphi 0, %s23
    %s37 = sphi 0, %s39
    %s40 = sphi 0, %s37
    %s41 = sphi 0, %s40
    %s57 = sphi 0, %s41
    %s69 = sphi 0, %s71
    %s72 = sphi 0, %s69
    %s73 = sphi 0, %s72
    %s89 = sphi 0, %s73
    %s97 = sphi 0, %s99
    %s100 = sphi 0, %s97
    %s101 = sphi 0, %s100
    %s117 = sphi 0, %s101
    %s121 = sphi 0, %s121
    %s123 = sphi 0, %s121
    %s124 = sphi 0, %s123
    %s138 = sphi 0, %s124
    %s142 = sphi 0, %s142
    %s144 = sphi 0, %s142
    %s145 = sphi 0, %s144
    %s159 = sphi 0, %s145
    %s163 = sphi 0, %s163
    %s165 = sphi 0, %s163
    %s166 = sphi 0, %s165
    %s180 = sphi 0, %s166
    %s184 = sphi 0, %s184
    %s186 = sphi 0, %s184
    %s187 = sphi 0, %s186
    %s201 = sphi 0, %s187
    %s209 = sphi 0, %s211
    %s212 = sphi 0, %s209
    %s213 = sphi 0, %s212
    %s229 = sphi 0, %s213
  $region4: #{tpu_custom_call.1} parent=0 // loop_header_branch
    %16 = sbr.rel (%p14) target = $region8
  $region5: #{tpu_custom_call.1} parent=0 // loop_body
    %s18 = ssub.s32 %s13, 1
    %s19 = ssub.s32 %s13, 2
    %s26 = sadd.s32 1, %s21
    %p27 = scmp.ge.s32.totalorder %s26, 3
    %s28 = scalar_select %p27, 0, %s26
    %s29 = sadd.s32 1, %s20
    %s30 = scalar_select %p27, %s29, %s20
    %p31 = scmp.ge.s32.totalorder %s30, 2
    %s32 = scalar_select %p31, 0, %s30
    %s33 = ssub.s32 %s20, %s32
    %s34 = ssub.s32 %s21, %s28
    %s35 = sor.u32 %s33, %s34
    %p36 = scmp.eq.s32.totalorder %s35, 0
    %s38 = sadd.s32 %s37, 1
    %s39 = scalar_select %p36, %s37, %s38
    %p42 = pneg %p36
    %p43 = scmp.eq.s32.totalorder %s13, 5
    %p44 = por %p42, %p43
    %p45 = scmp.ne.s32.totalorder %s37, %s40
    %p46 = scmp.eq.s32.totalorder %s13, 0
    %p47 = por %p45, %p46
    %p48 = scmp.ne.s32.totalorder %s37, %s40
    %p49 = scmp.eq.s32.totalorder %s18, 5
    %p50 = por %p48, %p49
    %p51 = scmp.ne.s32.totalorder %s40, %s41
    %p52 = scmp.eq.s32.totalorder %s18, 0
    %p53 = por %p51, %p52
    %p54 = scmp.ne.s32.totalorder %s40, %s41
    %p55 = scmp.eq.s32.totalorder %s19, 5
    %p56 = por %p54, %p55
    %p58 = scmp.ne.s32.totalorder %s41, %s57
    %p59 = scmp.eq.s32.totalorder %s19, 0
    %p60 = por %p58, %p59
    %s61 = sadd.s32 %s21, 1
    %s62 = smul.u32 %s61, 2
    %s63 = sadd.s32 %s28, 1
    %s64 = smul.u32 %s63, 2
    %s65 = ssub.s32 %s20, %s32
    %s66 = ssub.s32 %s62, %s64
    %s67 = sor.u32 %s65, %s66
    %p68 = scmp.eq.s32.totalorder %s67, 0
    %s70 = sadd.s32 %s69, 1
    %s71 = scalar_select %p68, %s69, %s70
    %p74 = pneg %p68
    %p75 = scmp.eq.s32.totalorder %s13, 5
    %p76 = por %p74, %p75
    %p77 = scmp.ne.s32.totalorder %s69, %s72
    %p78 = scmp.eq.s32.totalorder %s13, 0
    %p79 = por %p77, %p78
    %p80 = scmp.ne.s32.totalorder %s69, %s72
    %p81 = scmp.eq.s32.totalorder %s18, 5
    %p82 = por %p80, %p81
    %p83 = scmp.ne.s32.totalorder %s72, %s73
    %p84 = scmp.eq.s32.totalorder %s18, 0
    %p85 = por %p83, %p84
    %p86 = scmp.ne.s32.totalorder %s72, %s73
    %p87 = scmp.eq.s32.totalorder %s19, 5
    %p88 = por %p86, %p87
    %p90 = scmp.ne.s32.totalorder %s73, %s89
    %p91 = scmp.eq.s32.totalorder %s19, 0
    %p92 = por %p90, %p91
    %s93 = ssub.s32 %s20, %s32
    %s94 = ssub.s32 %s21, %s28
    %s95 = sor.u32 %s93, %s94
    %p96 = scmp.eq.s32.totalorder %s95, 0
    %s98 = sadd.s32 %s97, 1
    %s99 = scalar_select %p96, %s97, %s98
    %p102 = pneg %p96
    %p103 = scmp.eq.s32.totalorder %s13, 5
    %p104 = por %p102, %p103
    %p105 = scmp.ne.s32.totalorder %s97, %s100
    %p106 = scmp.eq.s32.totalorder %s13, 0
    %p107 = por %p105, %p106
    %p108 = scmp.ne.s32.totalorder %s97, %s100
    %p109 = scmp.eq.s32.totalorder %s18, 5
    %p110 = por %p108, %p109
    %p111 = scmp.ne.s32.totalorder %s100, %s101
    %p112 = scmp.eq.s32.totalorder %s18, 0
    %p113 = por %p111, %p112
    %p114 = scmp.ne.s32.totalorder %s100, %s101
    %p115 = scmp.eq.s32.totalorder %s19, 5
    %p116 = por %p114, %p115
    %p118 = scmp.ne.s32.totalorder %s101, %s117
    %p119 = scmp.eq.s32.totalorder %s19, 0
    %p120 = por %p118, %p119
    %s122 = sadd.s32 %s121, 1
    %p125 = scmp.eq.s32.totalorder %s13, 5
    %p126 = scmp.ne.s32.totalorder %s121, %s123
    %p127 = scmp.eq.s32.totalorder %s13, 0
    %p128 = por %p126, %p127
    %p129 = scmp.ne.s32.totalorder %s121, %s123
    %p130 = scmp.eq.s32.totalorder %s18, 5
    %p131 = por %p129, %p130
    %p132 = scmp.ne.s32.totalorder %s123, %s124
    %p133 = scmp.eq.s32.totalorder %s18, 0
    %p134 = por %p132, %p133
    %p135 = scmp.ne.s32.totalorder %s123, %s124
    %p136 = scmp.eq.s32.totalorder %s19, 5
    %p137 = por %p135, %p136
    %p139 = scmp.ne.s32.totalorder %s124, %s138
    %p140 = scmp.eq.s32.totalorder %s19, 0
    %p141 = por %p139, %p140
    %s143 = sadd.s32 %s142, 1
    %p146 = scmp.eq.s32.totalorder %s13, 5
    %p147 = scmp.ne.s32.totalorder %s142, %s144
    %p148 = scmp.eq.s32.totalorder %s13, 0
    %p149 = por %p147, %p148
    %p150 = scmp.ne.s32.totalorder %s142, %s144
    %p151 = scmp.eq.s32.totalorder %s18, 5
    %p152 = por %p150, %p151
    %p153 = scmp.ne.s32.totalorder %s144, %s145
    %p154 = scmp.eq.s32.totalorder %s18, 0
    %p155 = por %p153, %p154
    %p156 = scmp.ne.s32.totalorder %s144, %s145
    %p157 = scmp.eq.s32.totalorder %s19, 5
    %p158 = por %p156, %p157
    %p160 = scmp.ne.s32.totalorder %s145, %s159
    %p161 = scmp.eq.s32.totalorder %s19, 0
    %p162 = por %p160, %p161
    %s164 = sadd.s32 %s163, 1
    %p167 = scmp.eq.s32.totalorder %s13, 5
    %p168 = scmp.ne.s32.totalorder %s163, %s165
    %p169 = scmp.eq.s32.totalorder %s13, 0
    %p170 = por %p168, %p169
    %p171 = scmp.ne.s32.totalorder %s163, %s165
    %p172 = scmp.eq.s32.totalorder %s18, 5
    %p173 = por %p171, %p172
    %p174 = scmp.ne.s32.totalorder %s165, %s166
    %p175 = scmp.eq.s32.totalorder %s18, 0
    %p176 = por %p174, %p175
    %p177 = scmp.ne.s32.totalorder %s165, %s166
    %p178 = scmp.eq.s32.totalorder %s19, 5
    %p179 = por %p177, %p178
    %p181 = scmp.ne.s32.totalorder %s166, %s180
    %p182 = scmp.eq.s32.totalorder %s19, 0
    %p183 = por %p181, %p182
    %s185 = sadd.s32 %s184, 1
    %p188 = scmp.eq.s32.totalorder %s13, 5
    %p189 = scmp.ne.s32.totalorder %s184, %s186
    %p190 = scmp.eq.s32.totalorder %s13, 0
    %p191 = por %p189, %p190
    %p192 = scmp.ne.s32.totalorder %s184, %s186
    %p193 = scmp.eq.s32.totalorder %s18, 5
    %p194 = por %p192, %p193
    %p195 = scmp.ne.s32.totalorder %s186, %s187
    %p196 = scmp.eq.s32.totalorder %s18, 0
    %p197 = por %p195, %p196
    %p198 = scmp.ne.s32.totalorder %s186, %s187
    %p199 = scmp.eq.s32.totalorder %s19, 5
    %p200 = por %p198, %p199
    %p202 = scmp.ne.s32.totalorder %s187, %s201
    %p203 = scmp.eq.s32.totalorder %s19, 0
    %p204 = por %p202, %p203
    %s205 = ssub.s32 %s20, %s32
    %s206 = ssub.s32 %s21, %s28
    %s207 = sor.u32 %s205, %s206
    %p208 = scmp.eq.s32.totalorder %s207, 0
    %s210 = sadd.s32 %s209, 1
    %s211 = scalar_select %p208, %s209, %s210
    %p214 = pneg %p208
    %p215 = scmp.eq.s32.totalorder %s13, 5
    %p216 = por %p214, %p215
    %p217 = scmp.ne.s32.totalorder %s209, %s212
    %p218 = scmp.eq.s32.totalorder %s13, 0
    %p219 = por %p217, %p218
    %p220 = scmp.ne.s32.totalorder %s209, %s212
    %p221 = scmp.eq.s32.totalorder %s18, 5
    %p222 = por %p220, %p221
    %p223 = scmp.ne.s32.totalorder %s212, %s213
    %p224 = scmp.eq.s32.totalorder %s18, 0
    %p225 = por %p223, %p224
    %p226 = scmp.ne.s32.totalorder %s212, %s213
    %p227 = scmp.eq.s32.totalorder %s19, 5
    %p228 = por %p226, %p227
    %p230 = scmp.ne.s32.totalorder %s213, %s229
    %p231 = scmp.eq.s32.totalorder %s19, 0
    %p232 = por %p230, %p231
    %p233 = scmp.le.s32.totalorder 1, %s13
    %p234 = scmp.lt.s32.totalorder %s13, 7
    %p235 = pnand %p233, %p234
    %p236 = pneg %p235
    // Predicated region
    $region9: #{tpu_custom_call.1} parent=5 // pred_check
      _
    $region10: #{tpu_custom_call.1} parent=5 // pred_check_branch
      %238 = sbr.rel (%p235) target = $region12
    $region11: #{tpu_custom_call.1} parent=5 // pred_region
      %s239 = ssub.s32 %s13, 1
      // Predicated region
      $region13: #{tpu_custom_call.1} parent=11 // pred_check
        %p240 = pneg %p134
      $region14: #{tpu_custom_call.1} parent=11 // pred_check_branch
        %242 = sbr.rel (%p240) target = $region16
      $region15: #{tpu_custom_call.1} parent=11 // pred_region
        _
      $region16: #{tpu_custom_call.1} parent=11 // pred_fallthru
        _
      // Predicated region
      $region17: #{tpu_custom_call.1} parent=11 // pred_check
        %p243 = pneg %p155
      $region18: #{tpu_custom_call.1} parent=11 // pred_check_branch
        %245 = sbr.rel (%p243) target = $region20
      $region19: #{tpu_custom_call.1} parent=11 // pred_region
        _
      $region20: #{tpu_custom_call.1} parent=11 // pred_fallthru
        _
      // Predicated region
      $region21: #{tpu_custom_call.1} parent=11 // pred_check
        %p246 = pneg %p176
      $region22: #{tpu_custom_call.1} parent=11 // pred_check_branch
        %248 = sbr.rel (%p246) target = $region24
      $region23: #{tpu_custom_call.1} parent=11 // pred_region
        _
      $region24: #{tpu_custom_call.1} parent=11 // pred_fallthru
        _
      // Predicated region
      $region25: #{tpu_custom_call.1} parent=11 // pred_check
        %p249 = pneg %p197
      $region26: #{tpu_custom_call.1} parent=11 // pred_check_branch
        %251 = sbr.rel (%p249) target = $region28
      $region27: #{tpu_custom_call.1} parent=11 // pred_region
        _
      $region28: #{tpu_custom_call.1} parent=11 // pred_fallthru
        _
    $region12: #{tpu_custom_call.1} parent=5 // pred_fallthru
      _
    %p252 = scmp.lt.s32.totalorder %s13, 6
    // Predicated region
    $region29: #{tpu_custom_call.1} parent=5 // pred_check
      %p253 = pneg %p252
    $region30: #{tpu_custom_call.1} parent=5 // pred_check_branch
      %255 = sbr.rel (%p253) target = $region32
    $region31: #{tpu_custom_call.1} parent=5 // pred_region
      // Predicated region
      $region33: #{tpu_custom_call.1} parent=31 // pred_check
        %p256 = pneg %p47
      $region34: #{tpu_custom_call.1} parent=31 // pred_check_branch
        %258 = sbr.rel (%p256) target = $region36
      $region35: #{tpu_custom_call.1} parent=31 // pred_region
        %s259 = smul.u32 2, %s21
        %s260 = ssub.s32 7, %s259
        %p261 = scmp.lt.s32.totalorder %s260, 2
        %s262 = scalar_select %p261, %s260, 2
        %s263 = smul.u32 64, %s262
        %p264 = scmp.lt.s32.totalorder %s20, 1
        %s265 = scalar_select %p264, %s20, 1
        %p266 = scmp.lt.s32.totalorder %s259, 6
        %s267 = scalar_select %p266, %s259, 6
        %s268 = smul.addr %s265, 7
        %s269 = sadd.s32 %s267, %s268
        %s270 = smul.addr %s269, 4
        %s271 = scalar_lea.vmem %s0, %s270
        %s272 = smul.u32 2, %s21
        %s273 = ssub.s32 7, %s272
        %p274 = scmp.lt.s32.totalorder %s273, 2
        %s275 = scalar_select %p274, %s273, 2
        %s276 = smul.u32 64, %s275
      $region36: #{tpu_custom_call.1} parent=31 // pred_fallthru
        _
      // Predicated region
      $region37: #{tpu_custom_call.1} parent=31 // pred_check
        %p277 = pneg %p79
      $region38: #{tpu_custom_call.1} parent=31 // pred_check_branch
        %279 = sbr.rel (%p277) target = $region40
      $region39: #{tpu_custom_call.1} parent=31 // pred_region
        %s280 = sadd.s32 %s21, 1
        %s281 = smul.u32 %s280, 2
        %p282 = scmp.lt.s32.totalorder %s20, 1
        %s283 = scalar_select %p282, %s20, 1
        %p284 = scmp.lt.s32.totalorder %s281, 6
        %s285 = scalar_select %p284, %s281, 6
        %s286 = smul.addr %s283, 7
        %s287 = sadd.s32 %s285, %s286
        %s288 = smul.addr %s287, 4
        %s289 = scalar_lea.vmem %s1, %s288
        %s290 = sadd.s32 %s21, 1
        %s291 = smul.u32 %s290, 2
      $region40: #{tpu_custom_call.1} parent=31 // pred_fallthru
        _
      // Predicated region
      $region41: #{tpu_custom_call.1} parent=31 // pred_check
        %p292 = pneg %p107
      $region42: #{tpu_custom_call.1} parent=31 // pred_check_branch
        %294 = sbr.rel (%p292) target = $region44
      $region43: #{tpu_custom_call.1} parent=31 // pred_region
        %s295 = smul.u32 2, %s21
        %p296 = scmp.lt.s32.totalorder %s20, 1
        %s297 = scalar_select %p296, %s20, 1
        %p298 = scmp.lt.s32.totalorder %s295, 5
        %s299 = scalar_select %p298, %s295, 5
        %s300 = smul.addr %s297, 6
        %s301 = sadd.s32 %s299, %s300
        %s302 = smul.addr %s301, 4
        %s303 = scalar_lea.vmem %s2, %s302
        %s304 = smul.u32 2, %s21
      $region44: #{tpu_custom_call.1} parent=31 // pred_fallthru
        _
    $region32: #{tpu_custom_call.1} parent=5 // pred_fallthru
      _
    %p305 = scmp.le.s32.totalorder 1, %s13
    %p306 = scmp.lt.s32.totalorder %s13, 7
    %p307 = pnand %p305, %p306
    %p308 = pneg %p307
    // Predicated region
    $region45: #{tpu_custom_call.1} parent=5 // pred_check
      _
    $region46: #{tpu_custom_call.1} parent=5 // pred_check_branch
      %310 = sbr.rel (%p307) target = $region48
    $region47: #{tpu_custom_call.1} parent=5 // pred_region
      %s311 = ssub.s32 %s13, 1
      %s312 = smul.u32 2, %s23
      %s313 = ssub.s32 7, %s312
      %p314 = scmp.lt.s32.totalorder %s313, 2
      %s315 = scalar_select %p314, %s313, 2
      %s316 = smul.u32 64, %s315
      %p317 = scmp.lt.s32.totalorder %s22, 1
      %s318 = scalar_select %p317, %s22, 1
      %p319 = scmp.lt.s32.totalorder %s312, 6
      %s320 = scalar_select %p319, %s312, 6
      %s321 = smul.addr %s318, 7
      %s322 = sadd.s32 %s320, %s321
      %s323 = smul.addr %s322, 4
      %s324 = scalar_lea.vmem %s0, %s323
      %p325 = pneg %p53
      %p326 = pneg %p50
      %s327 = sadd.s32 %s23, 1
      %s328 = smul.u32 %s327, 2
      %p329 = scmp.lt.s32.totalorder %s22, 1
      %s330 = scalar_select %p329, %s22, 1
      %p331 = scmp.lt.s32.totalorder %s328, 6
      %s332 = scalar_select %p331, %s328, 6
      %s333 = smul.addr %s330, 7
      %s334 = sadd.s32 %s332, %s333
      %s335 = smul.addr %s334, 4
      %s336 = scalar_lea.vmem %s1, %s335
      %p337 = pneg %p85
      %p338 = pneg %p82
      %s339 = smul.u32 2, %s23
      %p340 = scmp.lt.s32.totalorder %s22, 1
      %s341 = scalar_select %p340, %s22, 1
      %p342 = scmp.lt.s32.totalorder %s339, 5
      %s343 = scalar_select %p342, %s339, 5
      %s344 = smul.addr %s341, 6
      %s345 = sadd.s32 %s343, %s344
      %s346 = smul.addr %s345, 4
      %s347 = scalar_lea.vmem %s2, %s346
      %p348 = pneg %p113
      %p349 = pneg %p110
      %p350 = pneg %p134
      %p351 = pneg %p131
      %p352 = pneg %p155
      %p353 = pneg %p152
      %p354 = pneg %p176
      %p355 = pneg %p173
      %p356 = pneg %p197
      %p357 = pneg %p194
      %p358 = pneg %p225
      %p359 = pneg %p222
      %s360 = smul.u32 2, %s23
      %p361 = scmp.lt.s32.totalorder %s22, 1
      %s362 = scalar_select %p361, %s22, 1
      %p363 = scmp.lt.s32.totalorder %s360, 5
      %s364 = scalar_select %p363, %s360, 5
      %s365 = smul.addr %s362, 6
      %s366 = sadd.s32 %s364, %s365
      %s367 = smul.addr %s366, 8
      %s368 = scalar_lea.vmem %s7, %s367
      %s369 = smul.u32 2, %s23
      %s370 = ssub.s32 7, %s369
      %p371 = scmp.lt.s32.totalorder %s370, 2
      %s372 = scalar_select %p371, %s370, 2
      %s373 = smul.u32 64, %s372
      %p374 = scmp.lt.s32.totalorder %s22, 1
      %s375 = scalar_select %p374, %s22, 1
      %p376 = scmp.lt.s32.totalorder %s369, 6
      %s377 = scalar_select %p376, %s369, 6
      %s378 = smul.addr %s375, 7
      %s379 = sadd.s32 %s377, %s378
      %s380 = smul.addr %s379, 4
      %s381 = scalar_lea.vmem %s0, %s380
      %s382 = smul.u32 2, %s23
      %s383 = ssub.s32 7, %s382
      %p384 = scmp.lt.s32.totalorder %s383, 2
      %s385 = scalar_select %p384, %s383, 2
      %s386 = smul.u32 64, %s385
      %s387 = sadd.s32 %s23, 1
      %s388 = smul.u32 %s387, 2
      %p389 = scmp.lt.s32.totalorder %s22, 1
      %s390 = scalar_select %p389, %s22, 1
      %p391 = scmp.lt.s32.totalorder %s388, 6
      %s392 = scalar_select %p391, %s388, 6
      %s393 = smul.addr %s390, 7
      %s394 = sadd.s32 %s392, %s393
      %s395 = smul.addr %s394, 4
      %s396 = scalar_lea.vmem %s1, %s395
      %s397 = sadd.s32 %s23, 1
      %s398 = smul.u32 %s397, 2
      %s399 = smul.u32 2, %s23
      %p400 = scmp.lt.s32.totalorder %s22, 1
      %s401 = scalar_select %p400, %s22, 1
      %p402 = scmp.lt.s32.totalorder %s399, 5
      %s403 = scalar_select %p402, %s399, 5
      %s404 = smul.addr %s401, 6
      %s405 = sadd.s32 %s403, %s404
      %s406 = smul.addr %s405, 4
      %s407 = scalar_lea.vmem %s2, %s406
      %s408 = smul.u32 2, %s23
      %s409 = smul.u32 2, %s23
      %p410 = scmp.lt.s32.totalorder %s22, 1
      %s411 = scalar_select %p410, %s22, 1
      %p412 = scmp.lt.s32.totalorder %s409, 5
      %s413 = scalar_select %p412, %s409, 5
      %s414 = smul.addr %s411, 6
      %s415 = sadd.s32 %s413, %s414
      %s416 = smul.addr %s415, 8
      %s417 = scalar_lea.vmem %s7, %s416
      %s418 = smul.u32 2, %s23
      %v420 = vld [vmem:[%s381] sm:$0xf]
      %v421 = vld [vmem:[%s381 + $0x4] sm:$0xf]
      %v422 = vld [vmem:[%s396] sm:$0xf]
      %v425 = vunpack.c.l.b16 %v420
      %v426 = vunpack.c.l.b16 %v421
      %v427 = vpack.c.b16 %v426, %v425
      %v429 = vld [vmem:[%s407] sm:$0xf]
      %v430 = vld [vmem:[%s407 + $0x4] sm:$0xf]
      %v431 = vunpack.c.l.bf16 %v429
      %v432 = vunpack.c.l.bf16 %v430
      %v433 = vld [vmem:[%s4] sm:$0x1]
      %v435 = vlaneseq
      %v436 = vshrl.u32 %v435, 7
      %v437 = vsub.s32 0, %v436
      %v438 = vrot.slane %v433, %v437
      %v440 = vadd.f32 %v431, %v438
      %v441 = vadd.f32 %v432, %v438
      %v442 = vld [vmem:[%s3] sm:$0xf]
      %vm443 = vcmask 64512
      %v445 = vsel %vm443, %v427, 0
      %vm447 = vcmask 1043456
      %v449 = vsel %vm447, %v442, 0
      %451 = vmatprep.subr.bf16.mxu0 0
      %452 = vmatpush1.bf16.msra.mxu0 0
      %453 = vmatprep.subr.bf16.mxu0 0
      %454 = vmatpush1.bf16.msra.mxu0 0
      %455 = vmatprep.subr.bf16.mxu0 0
      %456 = vmatpush1.bf16.msra.mxu0 0
      %457 = vmatprep.subr.bf16.mxu0 0
      %458 = vmatpush1.bf16.msra.mxu0 0
      %459 = vmatprep.subr.bf16.mxu0 0
      %460 = vmatpush1.bf16.msra.mxu0 0
      %461 = vmatprep.subr.bf16.mxu0 0
      %462 = vmatpush1.bf16.msra.mxu0 0
      %463 = vmatprep.subr.bf16.mxu0 0
      %464 = vmatpush1.bf16.msra.mxu0 0
      %465 = vmatprep.subr.bf16.mxu0 0
      %466 = vmatpush1.bf16.msra.mxu0 %v449
      %467 = vmatprep.subr.bf16.mxu0 0
      %468 = vmatpush2.bf16.msra.mxu0 0
      %469 = vmatprep.subr.bf16.mxu0 0
      %470 = vmatpush2.bf16.msra.mxu0 0
      %471 = vmatprep.subr.bf16.mxu0 0
      %472 = vmatpush2.bf16.msra.mxu0 0
      %473 = vmatprep.subr.bf16.mxu0 0
      %474 = vmatpush2.bf16.msra.mxu0 0
      %475 = vmatprep.subr.bf16.mxu0 0
      %476 = vmatpush2.bf16.msra.mxu0 0
      %477 = vmatprep.subr.bf16.mxu0 0
      %478 = vmatpush2.bf16.msra.mxu0 0
      %479 = vmatprep.subr.bf16.mxu0 0
      %480 = vmatpush2.bf16.msra.mxu0 0
      %481 = vmatprep.subr.bf16.mxu0 0
      %482 = vmatpush2.bf16.msra.mxu0 0
      %483 = vmatprep.mubr.bf16.mxu0 0
      %484 = vmatmul.mubr.bf16.gmra.mxu0 %v445
      %v485 = vpop.f32.mrf.mxu0
      %v486 = vadd.f32 0.0, %v485
      %v487 = vpop.f32.mrf.mxu0
      %v488 = vpop.f32.mrf.mxu0
      %v489 = vadd.f32 0.0, %v488
      %v490 = vpop.f32.mrf.mxu0
      %491 = vdwg.mxu0
      %v492 = vadd.f32 %v440, %v486
      %v493 = vadd.f32 %v441, %v489
      %s494 = scalar_lea.vmem %s3, 4
      %v495 = vld [vmem:[%s494] sm:$0xf]
      %vm497 = vcmask 1046528
      %v498 = vrot.slane %v427, 1
      %v499 = vrot.slane %v422, 1
      %v500 = vsel %vm497, %v498, %v499
      %v502 = vsel %vm443, %v500, 0
      %v505 = vsel %vm447, %v495, 0
      %507 = vmatprep.subr.bf16.mxu0 0
      %508 = vmatpush1.bf16.msra.mxu0 0
      %509 = vmatprep.subr.bf16.mxu0 0
      %510 = vmatpush1.bf16.msra.mxu0 0
      %511 = vmatprep.subr.bf16.mxu0 0
      %512 = vmatpush1.bf16.msra.mxu0 0
      %513 = vmatprep.subr.bf16.mxu0 0
      %514 = vmatpush1.bf16.msra.mxu0 0
      %515 = vmatprep.subr.bf16.mxu0 0
      %516 = vmatpush1.bf16.msra.mxu0 0
      %517 = vmatprep.subr.bf16.mxu0 0
      %518 = vmatpush1.bf16.msra.mxu0 0
      %519 = vmatprep.subr.bf16.mxu0 0
      %520 = vmatpush1.bf16.msra.mxu0 0
      %521 = vmatprep.subr.bf16.mxu0 0
      %522 = vmatpush1.bf16.msra.mxu0 %v505
      %523 = vmatprep.subr.bf16.mxu0 0
      %524 = vmatpush2.bf16.msra.mxu0 0
      %525 = vmatprep.subr.bf16.mxu0 0
      %526 = vmatpush2.bf16.msra.mxu0 0
      %527 = vmatprep.subr.bf16.mxu0 0
      %528 = vmatpush2.bf16.msra.mxu0 0
      %529 = vmatprep.subr.bf16.mxu0 0
      %530 = vmatpush2.bf16.msra.mxu0 0
      %531 = vmatprep.subr.bf16.mxu0 0
      %532 = vmatpush2.bf16.msra.mxu0 0
      %533 = vmatprep.subr.bf16.mxu0 0
      %534 = vmatpush2.bf16.msra.mxu0 0
      %535 = vmatprep.subr.bf16.mxu0 0
      %536 = vmatpush2.bf16.msra.mxu0 0
      %537 = vmatprep.subr.bf16.mxu0 0
      %538 = vmatpush2.bf16.msra.mxu0 0
      %539 = vmatprep.mubr.bf16.mxu0 0
      %540 = vmatmul.mubr.bf16.gmra.mxu0 %v502
      %v541 = vpop.f32.mrf.mxu0
      %v542 = vadd.f32 0.0, %v541
      %v543 = vpop.f32.mrf.mxu0
      %v544 = vpop.f32.mrf.mxu0
      %v545 = vadd.f32 0.0, %v544
      %v546 = vpop.f32.mrf.mxu0
      %547 = vdwg.mxu0
      %v548 = vadd.f32 %v492, %v542
      %v549 = vadd.f32 %v493, %v545
      %s550 = scalar_lea.vmem %s3, 8
      %v551 = vld [vmem:[%s550] sm:$0xf]
      %vm552 = vcmask 1045504
      %v553 = vrot.slane %v427, 2
      %v554 = vrot.slane %v422, 2
      %v555 = vsel %vm552, %v553, %v554
      %v557 = vsel %vm443, %v555, 0
      %v560 = vsel %vm447, %v551, 0
      %562 = vmatprep.subr.bf16.mxu0 0
      %563 = vmatpush1.bf16.msra.mxu0 0
      %564 = vmatprep.subr.bf16.mxu0 0
      %565 = vmatpush1.bf16.msra.mxu0 0
      %566 = vmatprep.subr.bf16.mxu0 0
      %567 = vmatpush1.bf16.msra.mxu0 0
      %568 = vmatprep.subr.bf16.mxu0 0
      %569 = vmatpush1.bf16.msra.mxu0 0
      %570 = vmatprep.subr.bf16.mxu0 0
      %571 = vmatpush1.bf16.msra.mxu0 0
      %572 = vmatprep.subr.bf16.mxu0 0
      %573 = vmatpush1.bf16.msra.mxu0 0
      %574 = vmatprep.subr.bf16.mxu0 0
      %575 = vmatpush1.bf16.msra.mxu0 0
      %576 = vmatprep.subr.bf16.mxu0 0
      %577 = vmatpush1.bf16.msra.mxu0 %v560
      %578 = vmatprep.subr.bf16.mxu0 0
      %579 = vmatpush2.bf16.msra.mxu0 0
      %580 = vmatprep.subr.bf16.mxu0 0
      %581 = vmatpush2.bf16.msra.mxu0 0
      %582 = vmatprep.subr.bf16.mxu0 0
      %583 = vmatpush2.bf16.msra.mxu0 0
      %584 = vmatprep.subr.bf16.mxu0 0
      %585 = vmatpush2.bf16.msra.mxu0 0
      %586 = vmatprep.subr.bf16.mxu0 0
      %587 = vmatpush2.bf16.msra.mxu0 0
      %588 = vmatprep.subr.bf16.mxu0 0
      %589 = vmatpush2.bf16.msra.mxu0 0
      %590 = vmatprep.subr.bf16.mxu0 0
      %591 = vmatpush2.bf16.msra.mxu0 0
      %592 = vmatprep.subr.bf16.mxu0 0
      %593 = vmatpush2.bf16.msra.mxu0 0
      %594 = vmatprep.mubr.bf16.mxu0 0
      %595 = vmatmul.mubr.bf16.gmra.mxu0 %v557
      %v596 = vpop.f32.mrf.mxu0
      %v597 = vadd.f32 0.0, %v596
      %v598 = vpop.f32.mrf.mxu0
      %v599 = vpop.f32.mrf.mxu0
      %v600 = vadd.f32 0.0, %v599
      %v601 = vpop.f32.mrf.mxu0
      %602 = vdwg.mxu0
      %v603 = vadd.f32 %v548, %v597
      %v604 = vadd.f32 %v549, %v600
      %v605 = vtanh.pop %v603
      %v606 = vtanh.pop %v604
      %v607 = vmul.f32 %v603, 0.5
      %v608 = vmul.f32 %v604, 0.5
      %v609 = vtanh.pop %v607
      %v610 = vtanh.pop %v608
      %v611 = vadd.f32 %v609, 1.0
      %v612 = vadd.f32 %v610, 1.0
      %615 = vrot.lane.b32.xlu0 %v611, 112
      %v616 = vpop.permute.xlu0 %615
      %617 = vrot.lane.b32.xlu0 %v612, 112
      %v618 = vpop.permute.xlu0 %617
      %v621 = vmul.f32 %v605, %v616
      %v622 = vmul.f32 %v606, %v618
      %v623 = vpack.c.bf16 %v622, %v621
      %v624 = vld [vmem:[%s5] sm:$0xf]
      %v625 = vld [vmem:[%s5 + $0x4] sm:$0xf]
      %v626 = vld [vmem:[%s6] sm:$0x1]
      %v628 = vlaneseq
      %v629 = vshrl.u32 %v628, 7
      %v630 = vsub.s32 0, %v629
      %v631 = vrot.slane %v626, %v630
      %v635 = vunpack.c.l.b16 %v624
      %v636 = vunpack.c.l.b16 %v625
      %v637 = vpack.c.b16 %v636, %v635
      %vm639 = vcmask 130048
      %v641 = vsel %vm639, %v623, 0
      %643 = vmatprep.subr.bf16.mxu0 0
      %644 = vmatpush1.bf16.msra.mxu0 0
      %645 = vmatprep.subr.bf16.mxu0 0
      %646 = vmatpush1.bf16.msra.mxu0 0
      %647 = vmatprep.subr.bf16.mxu0 0
      %648 = vmatpush1.bf16.msra.mxu0 0
      %649 = vmatprep.subr.bf16.mxu0 0
      %650 = vmatpush1.bf16.msra.mxu0 0
      %651 = vmatprep.subr.bf16.mxu0 0
      %652 = vmatpush1.bf16.msra.mxu0 0
      %653 = vmatprep.subr.bf16.mxu0 0
      %654 = vmatpush1.bf16.msra.mxu0 0
      %655 = vmatprep.subr.bf16.mxu0 0
      %656 = vmatpush1.bf16.msra.mxu0 0
      %657 = vmatprep.subr.bf16.mxu0 0
      %658 = vmatpush1.bf16.msra.mxu0 %v637
      %659 = vmatprep.subr.bf16.mxu0 0
      %660 = vmatpush2.bf16.msra.mxu0 0
      %661 = vmatprep.subr.bf16.mxu0 0
      %662 = vmatpush2.bf16.msra.mxu0 0
      %663 = vmatprep.subr.bf16.mxu0 0
      %664 = vmatpush2.bf16.msra.mxu0 0
      %665 = vmatprep.subr.bf16.mxu0 0
      %666 = vmatpush2.bf16.msra.mxu0 0
      %667 = vmatprep.subr.bf16.mxu0 0
      %668 = vmatpush2.bf16.msra.mxu0 0
      %669 = vmatprep.subr.bf16.mxu0 0
      %670 = vmatpush2.bf16.msra.mxu0 0
      %671 = vmatprep.subr.bf16.mxu0 0
      %672 = vmatpush2.bf16.msra.mxu0 0
      %673 = vmatprep.subr.bf16.mxu0 0
      %674 = vmatpush2.bf16.msra.mxu0 0
      %675 = vmatprep.mubr.bf16.mxu0 0
      %676 = vmatmul.mubr.bf16.gmra.mxu0 %v641
      %v677 = vpop.f32.mrf.mxu0
      %v678 = vadd.f32 %v631, %v677
      %v679 = vpop.f32.mrf.mxu0
      %v680 = vpop.f32.mrf.mxu0
      %v681 = vadd.f32 %v631, %v680
      %v682 = vpop.f32.mrf.mxu0
      %683 = vdwg.mxu0
      %v684 = vunpack.c.l.bf16 %v427
      %v685 = vunpack.c.h.bf16 %v427
      %v686 = vunpack.c.l.bf16 %v422
      %vm690 = vcmask 1045504
      %v691 = vrot.slane %v684, 2
      %v692 = vrot.slane %v685, 2
      %v693 = vsel %vm690, %v691, %v692
      %v694 = vrot.slane %v686, 2
      %v695 = vsel %vm690, %v692, %v694
      %v698 = vadd.f32 %v678, %v693
      %v699 = vadd.f32 %v681, %v695
      %v700 = vsel %vm443, %v698, %v678
      %v701 = vsel %vm443, %v699, %v681
      %702 = vst.msk [vmem:[%s417] sm:$0xff] %vm639, %v700
      %703 = vst.msk [vmem:[%s417 + $0x8] sm:$0xff] %vm639, %v701
      %s704 = smul.u32 2, %s23
      %p705 = scmp.lt.s32.totalorder %s22, 1
      %s706 = scalar_select %p705, %s22, 1
      %p707 = scmp.lt.s32.totalorder %s704, 5
      %s708 = scalar_select %p707, %s704, 5
      %s709 = smul.addr %s706, 6
      %s710 = sadd.s32 %s708, %s709
      %s711 = smul.addr %s710, 8
      %s712 = scalar_lea.vmem %s7, %s711
      // Predicated region
      $region49: #{tpu_custom_call.1} parent=47 // pred_check
        %p713 = pneg %p222
      $region50: #{tpu_custom_call.1} parent=47 // pred_check_branch
        %715 = sbr.rel (%p713) target = $region52
      $region51: #{tpu_custom_call.1} parent=47 // pred_region
        %s716 = smul.u32 2, %s23
      $region52: #{tpu_custom_call.1} parent=47 // pred_fallthru
        _
    $region48: #{tpu_custom_call.1} parent=5 // pred_fallthru
      _
    %p717 = scmp.le.s32.totalorder 2, %s13
    // Predicated region
    $region53: #{tpu_custom_call.1} parent=5 // pred_check
      %p718 = pneg %p717
    $region54: #{tpu_custom_call.1} parent=5 // pred_check_branch
      %720 = sbr.rel (%p718) target = $region56
    $region55: #{tpu_custom_call.1} parent=5 // pred_region
      %s721 = ssub.s32 %s13, 2
      // Predicated region
      $region57: #{tpu_custom_call.1} parent=55 // pred_check
        %p722 = pneg %p228
      $region58: #{tpu_custom_call.1} parent=55 // pred_check_branch
        %724 = sbr.rel (%p722) target = $region60
      $region59: #{tpu_custom_call.1} parent=55 // pred_region
        %s725 = smul.u32 2, %s25
        %p726 = scmp.lt.s32.totalorder %s24, 1
        %s727 = scalar_select %p726, %s24, 1
        %p728 = scmp.lt.s32.totalorder %s725, 5
        %s729 = scalar_select %p728, %s725, 5
        %s730 = smul.addr %s727, 6
        %s731 = sadd.s32 %s729, %s730
        %s732 = smul.addr %s731, 8
        %s733 = scalar_lea.vmem %s7, %s732
      $region60: #{tpu_custom_call.1} parent=55 // pred_fallthru
        _
    $region56: #{tpu_custom_call.1} parent=5 // pred_fallthru
      _
  $region6: #{tpu_custom_call.1} parent=0 // loop_footer
    %s17 = sadd.s32 1, %s13
  $region7: #{tpu_custom_call.1} parent=0 // loop_footer_branch
    %12 = sbr.rel target = $region3
  $region8: #{tpu_custom_call.1} parent=0 // loop_exit
    _

</llo_original>
